<compile_context>
chip_gen: v7x
topology: tpu7x:2x2x1
jax: 0.10.0
libtpu: 0.0.40
codegen_flags: <defaults>
</compile_context>

<pallas_src>
import functools

import jax
import jax.numpy as jnp
from jax.experimental import pallas as pl
from jax.experimental.pallas import tpu as pltpu


def _round_up(n: int, m: int) -> int:
    return ((n + m - 1) // m) * m


def _ffn_kernel(x_ref, w1_ref, b1_ref, w2_ref, b2_ref, o_ref, acc_ref):
    """One (row-tile, hidden-slice) step of the fused FFN.

    Grid = (row tiles, hidden slices); hidden axis is innermost ("arbitrary").
    acc_ref is a (tm, dim) f32 accumulator that stays resident across the
    hidden slices of a given row tile.
    """
    j = pl.program_id(1)

    @pl.when(j == 0)
    def _init():
        # Fold the second bias into the accumulator init (done once per tile).
        acc_ref[...] = jnp.broadcast_to(
            b2_ref[...].astype(jnp.float32), acc_ref.shape)

    # Linear 1 slice: (tm, dim) @ (dim, th) -> (tm, th).
    # Operands kept in native dtype; f32 accumulation on the MXU.
    h = jnp.dot(x_ref[...], w1_ref[...], preferred_element_type=jnp.float32)
    h = h + b1_ref[...].astype(jnp.float32)

    # Swish in f32 (sigmoid -> EUP slot, mul -> VPU slot).
    h = h * jax.nn.sigmoid(h)

    # (Dropout p=0.0 is identity -> skipped.)

    # Linear 2 slice: (tm, th) @ (th, dim) accumulated into the f32 scratch.
    acc_ref[...] += jnp.dot(h.astype(w2_ref.dtype), w2_ref[...],
                            preferred_element_type=jnp.float32)

    @pl.when(j == pl.num_programs(1) - 1)
    def _finalize():
        o_ref[...] = acc_ref[...].astype(o_ref.dtype)


@functools.partial(
    jax.jit, static_argnames=("row_tile", "hidden_tile", "vmem_limit_bytes"))
def feed_forward(x, w1, b1, w2, b2, *, row_tile=256, hidden_tile=None,
                 vmem_limit_bytes=48 * 1024 * 1024):
    """Conformer FFN forward. x: (B, S, dim) -> (B, S, dim).

    Weight layout (transposed vs. torch.nn.Linear):
      w1: (dim, hidden), b1: (hidden,), w2: (hidden, dim), b2: (dim,)

    row_tile:    rows per grid step (rounded to a multiple of 16 sublanes).
    hidden_tile: None -> weights fully resident (single hidden grid step,
                 single-buffered weights); int -> tile hidden in slices of
                 that size (multiple of 128) with an f32 accumulator — use on
                 v7x / very large dim*mult so weights need not be resident.
    vmem_limit_bytes: scoped VMEM limit; 48 MiB is safe on v5e/v6e/v7x.
                 (v5e/v6e can pass ~100 MiB for very large resident weights.)
    """
    B, S, dim = x.shape
    hidden = w1.shape[1]
    M = B * S
    out_dtype = x.dtype

    # ---- lane-dense / sublane-aligned padded geometry --------------------
    dim_p = _round_up(dim, 128)          # last dims lane-dense (mult. of 128)
    hid_p = _round_up(hidden, 128)

    tm = min(_round_up(row_tile, 16), _round_up(M, 16))   # sublane-aligned
    M_p = _round_up(M, tm)

    if hidden_tile is None:
        th = hid_p
    else:
        th = max(128, min(_round_up(hidden_tile, 128), hid_p))
        hid_p = _round_up(hid_p, th)     # make the hidden axis divide evenly
    n_h = hid_p // th

    # Zero padding is exact: padded x/W rows/cols contribute 0, padded hidden
    # units see swish(0)=0, padded output cols are sliced away below.
    x2 = jnp.pad(x.reshape(M, dim), ((0, M_p - M), (0, dim_p - dim)))
    w1p = jnp.pad(w1, ((0, dim_p - dim), (0, hid_p - hidden)))
    w2p = jnp.pad(w2, ((0, hid_p - hidden), (0, dim_p - dim)))
    b1p = jnp.pad(b1, (0, hid_p - hidden)).reshape(1, hid_p)
    b2p = jnp.pad(b2, (0, dim_p - dim)).reshape(1, dim_p)

    # Blocks whose index never changes across the grid only need one VMEM
    # buffer; x / out keep default double-buffering for pipelining.
    w_mode = pl.Buffered(1) if n_h == 1 else pl.Buffered(2)
    const_mode = pl.Buffered(1)

    nbytes = lambda a: a.size * a.dtype.itemsize
    cost = pl.CostEstimate(
        flops=4 * M_p * dim_p * hid_p,                 # two matmuls
        transcendentals=M_p * hid_p,                   # sigmoid
        bytes_accessed=(nbytes(x2)
                        + M_p * dim_p * jnp.dtype(out_dtype).itemsize
                        + nbytes(w1p) + nbytes(w2p) + nbytes(b1p) + nbytes(b2p)),
    )

    grid = (M_p // tm, n_h)
    out2 = pl.pallas_call(
        _ffn_kernel,
        out_shape=jax.ShapeDtypeStruct((M_p, dim_p), out_dtype),
        grid_spec=pltpu.PrefetchScalarGridSpec(
            num_scalar_prefetch=0,
            grid=grid,
            in_specs=[
                pl.BlockSpec((tm, dim_p), lambda i, j: (i, 0)),       # x tile
                pl.BlockSpec((dim_p, th), lambda i, j: (0, j),
                             pipeline_mode=w_mode),                   # W1 slice
                pl.BlockSpec((1, th), lambda i, j: (0, j),
                             pipeline_mode=w_mode),                   # b1 slice
                pl.BlockSpec((th, dim_p), lambda i, j: (j, 0),
                             pipeline_mode=w_mode),                   # W2 slice
                pl.BlockSpec((1, dim_p), lambda i, j: (0, 0),
                             pipeline_mode=const_mode),               # b2
            ],
            out_specs=pl.BlockSpec((tm, dim_p), lambda i, j: (i, 0)),
            scratch_shapes=[pltpu.VMEM((tm, dim_p), jnp.float32)],    # acc
        ),
        compiler_params=pltpu.CompilerParams(
            dimension_semantics=("parallel", "arbitrary"),
            vmem_limit_bytes=vmem_limit_bytes,
        ),
        cost_estimate=cost,
    )(x2, w1p, b1p, w2p, b2p)

    return out2[:M, :dim].reshape(B, S, dim)


def init_params(key, dim, mult=4, dtype=jnp.float32):
    """Parameter init matching nn.Linear defaults (weights stored transposed)."""
    hidden = dim * mult
    k1, k2, k3, k4 = jax.random.split(key, 4)
    lim1 = 1.0 / (dim ** 0.5)
    lim2 = 1.0 / (hidden ** 0.5)
    w1 = jax.random.uniform(k1, (dim, hidden), dtype, -lim1, lim1)
    b1 = jax.random.uniform(k2, (hidden,), dtype, -lim1, lim1)
    w2 = jax.random.uniform(k3, (hidden, dim), dtype, -lim2, lim2)
    b2 = jax.random.uniform(k4, (dim,), dtype, -lim2, lim2)
    return w1, b1, w2, b2


def _reference(x, w1, b1, w2, b2):
    xf = x.astype(jnp.float32)
    h = jnp.einsum("bsd,dh->bsh", xf, w1.astype(jnp.float32),
                   precision="highest") + b1.astype(jnp.float32)
    h = h * jax.nn.sigmoid(h)
    y = jnp.einsum("bsh,hd->bsd", h, w2.astype(jnp.float32),
                   precision="highest") + b2.astype(jnp.float32)
    return y.astype(x.dtype)


if __name__ == "__main__":
    key = jax.random.PRNGKey(0)
    kx, kp = jax.random.split(key)

    B, S, dim, mult = 2, 8, 128, 4          # hidden = 512, lane-dense shapes
    x = jax.random.normal(kx, (B, S, dim), dtype=jnp.float32)
    w1, b1, w2, b2 = init_params(kp, dim, mult)

    ref = _reference(x, w1, b1, w2, b2)

    # Path 1: fully resident, single-buffered weights (one hidden step).
    out = jax.block_until_ready(feed_forward(x, w1, b1, w2, b2))
    assert out.shape == x.shape
    assert jnp.allclose(out, ref, atol=5e-3, rtol=5e-3), (
        "max abs err (resident path) = "
        f"{float(jnp.max(jnp.abs(out - ref)))}")

    # Path 2: hidden-axis tiled accumulator (v7x-style VMEM-bounded weights).
    out_t = jax.block_until_ready(
        feed_forward(x, w1, b1, w2, b2, hidden_tile=256))
    assert jnp.allclose(out_t, ref, atol=5e-3, rtol=5e-3), (
        "max abs err (tiled path) = "
        f"{float(jnp.max(jnp.abs(out_t - ref)))}")

    print("KERNEL_OK")
</pallas_src>

<mosaic_0001>
module attributes {stable_mosaic.version = 11 : i64} {
  func.func @_ffn_kernel(%arg0: i32, %arg1: i32, %arg2: memref<16x128xf32, #tpu.memory_space<vmem>>, %arg3: memref<128x512xf32, #tpu.memory_space<vmem>>, %arg4: memref<1x512xf32, #tpu.memory_space<vmem>>, %arg5: memref<512x128xf32, #tpu.memory_space<vmem>>, %arg6: memref<1x128xf32, #tpu.memory_space<vmem>>, %arg7: memref<16x128xf32, #tpu.memory_space<vmem>>, %arg8: memref<16x128xf32, #tpu.memory_space<vmem>>) attributes {dimension_semantics = [#tpu.dimension_semantics<parallel>, #tpu.dimension_semantics<arbitrary>], iteration_bounds = array<i64: 1, 1>, scalar_prefetch = 0 : i64, scratch_operands = 1 : i64, tpu.core_type = #tpu.core_type<tc>, window_params = [{transform_indices = @transform_0, window_bounds = array<i64: 16, 128>}, {pipeline_mode = #tpu.pipeline_mode<synchronous>, transform_indices = @transform_1, window_bounds = array<i64: 128, 512>}, {pipeline_mode = #tpu.pipeline_mode<synchronous>, transform_indices = @transform_2, window_bounds = array<i64: 1, 512>}, {pipeline_mode = #tpu.pipeline_mode<synchronous>, transform_indices = @transform_3, window_bounds = array<i64: 512, 128>}, {pipeline_mode = #tpu.pipeline_mode<synchronous>, transform_indices = @transform_4, window_bounds = array<i64: 1, 128>}, {transform_indices = @transform_5, window_bounds = array<i64: 16, 128>}]} {
    %c0_i32 = arith.constant 0 : i32
    %0 = arith.cmpi eq, %arg1, %c0_i32 : i32
    %1 = arith.extui %0 : i1 to i32
    %c0_i32_0 = arith.constant 0 : i32
    %2 = arith.cmpi ne, %1, %c0_i32_0 : i32
    scf.if %2 {
      %c0_16 = arith.constant 0 : index
      %c0_17 = arith.constant 0 : index
      %23 = vector.load %arg6[%c0_16, %c0_17] : memref<1x128xf32, #tpu.memory_space<vmem>>, vector<1x128xf32>
      %24 = vector.shape_cast %23 : vector<1x128xf32> to vector<1x128xf32>
      %25 = vector.broadcast %24 : vector<1x128xf32> to vector<16x128xf32>
      %c0_18 = arith.constant 0 : index
      %c0_19 = arith.constant 0 : index
      %26 = vector.load %arg8[%c0_18, %c0_19] : memref<16x128xf32, #tpu.memory_space<vmem>>, vector<16x128xf32>
      tpu.vector_store %arg8[%c0_18, %c0_19], %25 {strides = array<i32>} : memref<16x128xf32, #tpu.memory_space<vmem>>, vector<16x128xf32>,
    } else {
    }
    %c0 = arith.constant 0 : index
    %c0_1 = arith.constant 0 : index
    %3 = vector.load %arg2[%c0, %c0_1] : memref<16x128xf32, #tpu.memory_space<vmem>>, vector<16x128xf32>
    %c0_2 = arith.constant 0 : index
    %c0_3 = arith.constant 0 : index
    %4 = vector.load %arg3[%c0_2, %c0_3] : memref<128x512xf32, #tpu.memory_space<vmem>>, vector<128x512xf32>
    %cst = arith.constant dense<0.000000e+00> : vector<16x512xf32>
    %5 = tpu.matmul %3, %4, %cst {dimension_numbers = #tpu.dot_dimension_numbers<[1], [0], [0], [1], [0, 0, 1, 1], [], []>} : vector<16x128xf32>, vector<128x512xf32>, vector<16x512xf32> -> vector<16x512xf32>
    %c0_4 = arith.constant 0 : index
    %c0_5 = arith.constant 0 : index
    %6 = vector.load %arg4[%c0_4, %c0_5] : memref<1x512xf32, #tpu.memory_space<vmem>>, vector<1x512xf32>
    %7 = vector.broadcast %6 : vector<1x512xf32> to vector<16x512xf32>
    %8 = arith.addf %5, %7 : vector<16x512xf32>
    %9 = arith.negf %8 : vector<16x512xf32>
    %10 = math.exp %9 : vector<16x512xf32>
    %cst_6 = arith.constant 1.000000e+00 : f32
    %11 = vector.broadcast %cst_6 : f32 to vector<16x512xf32>
    %12 = arith.addf %11, %10 : vector<16x512xf32>
    %13 = arith.divf %11, %12 : vector<16x512xf32>
    %14 = arith.mulf %8, %13 : vector<16x512xf32>
    %c0_7 = arith.constant 0 : index
    %c0_8 = arith.constant 0 : index
    %15 = vector.load %arg8[%c0_7, %c0_8] : memref<16x128xf32, #tpu.memory_space<vmem>>, vector<16x128xf32>
    %c0_9 = arith.constant 0 : index
    %c0_10 = arith.constant 0 : index
    %16 = vector.load %arg5[%c0_9, %c0_10] : memref<512x128xf32, #tpu.memory_space<vmem>>, vector<512x128xf32>
    %cst_11 = arith.constant dense<0.000000e+00> : vector<16x128xf32>
    %17 = tpu.matmul %14, %16, %cst_11 {dimension_numbers = #tpu.dot_dimension_numbers<[1], [0], [0], [1], [0, 0, 1, 1], [], []>} : vector<16x512xf32>, vector<512x128xf32>, vector<16x128xf32> -> vector<16x128xf32>
    %18 = arith.addf %15, %17 : vector<16x128xf32>
    %c0_12 = arith.constant 0 : index
    %c0_13 = arith.constant 0 : index
    %19 = vector.load %arg8[%c0_12, %c0_13] : memref<16x128xf32, #tpu.memory_space<vmem>>, vector<16x128xf32>
    tpu.vector_store %arg8[%c0_12, %c0_13], %18 {strides = array<i32>} : memref<16x128xf32, #tpu.memory_space<vmem>>, vector<16x128xf32>,
    %c0_i32_14 = arith.constant 0 : i32
    %20 = arith.cmpi eq, %arg1, %c0_i32_14 : i32
    %21 = arith.extui %20 : i1 to i32
    %c0_i32_15 = arith.constant 0 : i32
    %22 = arith.cmpi ne, %21, %c0_i32_15 : i32
    scf.if %22 {
      %c0_16 = arith.constant 0 : index
      %c0_17 = arith.constant 0 : index
      %23 = vector.load %arg8[%c0_16, %c0_17] : memref<16x128xf32, #tpu.memory_space<vmem>>, vector<16x128xf32>
      %c0_18 = arith.constant 0 : index
      %c0_19 = arith.constant 0 : index
      %24 = vector.load %arg7[%c0_18, %c0_19] : memref<16x128xf32, #tpu.memory_space<vmem>>, vector<16x128xf32>
      tpu.vector_store %arg7[%c0_18, %c0_19], %23 {strides = array<i32>} : memref<16x128xf32, #tpu.memory_space<vmem>>, vector<16x128xf32>,
    } else {
    }
    return
  }
  func.func @transform_0(%arg0: i32, %arg1: i32) -> (i32, i32) {
    %c0_i32 = arith.constant 0 : i32
    %c0_i32_0 = arith.constant 0 : i32
    return %arg0, %c0_i32 : i32, i32
  }
  func.func @transform_1(%arg0: i32, %arg1: i32) -> (i32, i32) {
    %c0_i32 = arith.constant 0 : i32
    %c0_i32_0 = arith.constant 0 : i32
    return %c0_i32, %arg1 : i32, i32
  }
  func.func @transform_2(%arg0: i32, %arg1: i32) -> (i32, i32) {
    %c0_i32 = arith.constant 0 : i32
    %c0_i32_0 = arith.constant 0 : i32
    return %c0_i32, %arg1 : i32, i32
  }
  func.func @transform_3(%arg0: i32, %arg1: i32) -> (i32, i32) {
    %c0_i32 = arith.constant 0 : i32
    %c0_i32_0 = arith.constant 0 : i32
    return %arg1, %c0_i32 : i32, i32
  }
  func.func @transform_4(%arg0: i32, %arg1: i32) -> (i32, i32) {
    %c0_i32 = arith.constant 0 : i32
    %c0_i32_0 = arith.constant 0 : i32
    %c0_i32_1 = arith.constant 0 : i32
    return %c0_i32, %c0_i32_0 : i32, i32
  }
  func.func @transform_5(%arg0: i32, %arg1: i32) -> (i32, i32) {
    %c0_i32 = arith.constant 0 : i32
    %c0_i32_0 = arith.constant 0 : i32
    return %arg0, %c0_i32 : i32, i32
  }
}

</mosaic_0001>

<llo_original>
// kernel: feed_forward.1
$region0: #{feed_forward.1}
  #allocation0 [shape = 'u32[]', space=smem, size = 0x4, offset = 0x4, fixed_abs, tag = 'smem constant byte address 0x4 - core index']
  #allocation1 [shape = 'u32[144,128]{1,0:T(1,128)}', space=vmem, size = 0x12000, scoped, tag = 'internal scratch']
  #allocation2 [shape = 'f32[16,128]{1,0:T(8,128)}', space=vmem, size = 0x2000, scoped, tag = 'scratch operand']
  %s0 = inlined_call_operand.hbm [shape: f32[16,128], index: 0, kind: input, shape index: {}]
  %s1 = inlined_call_operand.hbm [shape: f32[128,512], index: 1, kind: input, shape index: {}]
  %s2 = inlined_call_operand.vmem [shape: f32[1,512], index: 2, kind: input, shape index: {}]
  %s3 = inlined_call_operand.hbm [shape: f32[512,128], index: 3, kind: input, shape index: {}]
  %s4 = inlined_call_operand.vmem [shape: f32[1,128], index: 4, kind: input, shape index: {}]
  %s5 = inlined_call_operand.hbm [shape: f32[16,128], index: 5, kind: output, shape index: {}]
  %s6 = sld [smem:[#allocation0]]
  $region50: #{feed_forward.1} parent=0
    _
  %s8 = ssub.s32 1, %s6
  %s9 = scalar_select 0, %s8, %s6
  $region1: #{feed_forward.1} parent=0
    #allocation3 [shape = 'u8[8192]{0}', space=vmem, size = 0x2000, scoped, tag = 'input window, operand 0, single buffered']
    #allocation4 [shape = 's32[1]{0}', space=sflag, size = 0x4, scoped, tag = 'scoped memory for feed_forward.1']
    #allocation5 [shape = 's32[1]{0}', space=sflag, size = 0x4, scoped, tag = 'scoped memory for feed_forward.1']
    #allocation6 [shape = 'u8[262144]{0}', space=vmem, size = 0x40000, scoped, tag = 'input window, operand 1, single buffered']
    #allocation7 [shape = 's32[1]{0}', space=sflag, size = 0x4, scoped, tag = 'scoped memory for feed_forward.1']
    #allocation8 [shape = 'u8[262144]{0}', space=vmem, size = 0x40000, scoped, tag = 'input window, operand 3, single buffered']
    #allocation9 [shape = 'u8[8192]{0}', space=vmem, size = 0x2000, scoped, tag = 'output window, operand 0, single buffered']
    %10 = vsyncpa [#allocation4], 0
    %11 = vsyncpa [#allocation7], 0
    %12 = vsyncpa [#allocation5], 0
    // Predicated region
    $region2: #{feed_forward.1} parent=1 // pred_check
      _
    $region3: #{feed_forward.1} parent=1 // pred_check_branch
      %14 = sbr.rel (0) target = $region5
    $region4: #{feed_forward.1} parent=1 // pred_region
      %s16 = ssub.s32 256, 256
      %17 = vsyncadd [#allocation4], %s16
      %s18 = sshll.u32 [#allocation3], 4
      %s19 = int_to_ptr.vmem [resolvable:$true] %s18
      %24 = dma.hbm_to_vmem [thread:$0]  %s0, 256, %s19, [#allocation4], 128, 128, 8
    $region5: #{feed_forward.1} parent=1 // pred_fallthru
      _
    // Predicated region
    $region6: #{feed_forward.1} parent=1 // pred_check
      _
    $region7: #{feed_forward.1} parent=1 // pred_check_branch
      %26 = sbr.rel (0) target = $region9
    $region8: #{feed_forward.1} parent=1 // pred_region
      %s28 = ssub.s32 8192, 8192
      %29 = vsyncadd [#allocation7], %s28
      %s30 = sshll.u32 [#allocation6], 4
      %s31 = int_to_ptr.vmem [resolvable:$true] %s30
      %36 = dma.hbm_to_vmem [thread:$0]  %s1, 8192, %s31, [#allocation7], 512, 512, 32
    $region9: #{feed_forward.1} parent=1 // pred_fallthru
      _
    // Predicated region
    $region10: #{feed_forward.1} parent=1 // pred_check
      _
    $region11: #{feed_forward.1} parent=1 // pred_check_branch
      %38 = sbr.rel (0) target = $region13
    $region12: #{feed_forward.1} parent=1 // pred_region
      _
    $region13: #{feed_forward.1} parent=1 // pred_fallthru
      _
    // Predicated region
    $region14: #{feed_forward.1} parent=1 // pred_check
      _
    $region15: #{feed_forward.1} parent=1 // pred_check_branch
      %40 = sbr.rel (0) target = $region17
    $region16: #{feed_forward.1} parent=1 // pred_region
      %s42 = ssub.s32 8192, 8192
      %43 = vsyncadd [#allocation7], %s42
      %s44 = sshll.u32 [#allocation8], 4
      %s45 = int_to_ptr.vmem [resolvable:$true] %s44
      %50 = dma.hbm_to_vmem [thread:$0]  %s3, 8192, %s45, [#allocation7], 128, 128, 8
    $region17: #{feed_forward.1} parent=1 // pred_fallthru
      _
    // Predicated region
    $region18: #{feed_forward.1} parent=1 // pred_check
      _
    $region19: #{feed_forward.1} parent=1 // pred_check_branch
      %52 = sbr.rel (0) target = $region21
    $region20: #{feed_forward.1} parent=1 // pred_region
      _
    $region21: #{feed_forward.1} parent=1 // pred_fallthru
      _
    // Predicated region
    $region22: #{feed_forward.1} parent=1 // pred_check
      _
    $region23: #{feed_forward.1} parent=1 // pred_check_branch
      %54 = sbr.rel (0) target = $region25
    $region24: #{feed_forward.1} parent=1 // pred_region
      %55 = dma.done [#allocation4], 256
    $region25: #{feed_forward.1} parent=1 // pred_fallthru
      _
    // Predicated region
    $region26: #{feed_forward.1} parent=1 // pred_check
      _
    $region27: #{feed_forward.1} parent=1 // pred_check_branch
      %57 = sbr.rel (0) target = $region29
    $region28: #{feed_forward.1} parent=1 // pred_region
      %58 = dma.done [#allocation7], 8192
    $region29: #{feed_forward.1} parent=1 // pred_fallthru
      _
    // Predicated region
    $region30: #{feed_forward.1} parent=1 // pred_check
      _
    $region31: #{feed_forward.1} parent=1 // pred_check_branch
      %60 = sbr.rel (0) target = $region33
    $region32: #{feed_forward.1} parent=1 // pred_region
      %61 = dma.done [#allocation7], 8192
    $region33: #{feed_forward.1} parent=1 // pred_fallthru
      _
    %p62 = scmp.eq.s32.totalorder 0, 0
    // Predicated region
    $region34: #{feed_forward.1} parent=1 // pred_check
      %p63 = pneg %p62
    $region35: #{feed_forward.1} parent=1 // pred_check_branch
      %65 = sbr.rel (%p63) target = $region37
    $region36: #{feed_forward.1} parent=1 // pred_region
      %v66 = vld [vmem:[%s4] sm:$0x1]
      %v68 = vlaneseq
      %v69 = vshrl.u32 %v68, 7
      %v70 = vsub.s32 0, %v69
      %v71 = vrot.slane %v66, %v70
      %73 = vst [vmem:[#allocation2] sm:$0xff] %v71
      %74 = vst [vmem:[#allocation2 + $0x8] sm:$0xff] %v71
    $region37: #{feed_forward.1} parent=1 // pred_fallthru
      _
    %v75 = vld [vmem:[#allocation3] sm:$0xff]
    %v76 = vld [vmem:[#allocation3 + $0x8] sm:$0xff]
    %v77 = vld [vmem:[#allocation6] sm:$0xff]
    %v78 = vld [vmem:[#allocation6 + $0x8] sm:$0xff]
    %v79 = vld [vmem:[#allocation6 + $0x10] sm:$0xff]
    %v80 = vld [vmem:[#allocation6 + $0x18] sm:$0xff]
    %v81 = vld [vmem:[#allocation6 + $0x20] sm:$0xff]
    %v82 = vld [vmem:[#allocation6 + $0x28] sm:$0xff]
    %v83 = vld [vmem:[#allocation6 + $0x30] sm:$0xff]
    %v84 = vld [vmem:[#allocation6 + $0x38] sm:$0xff]
    %v85 = vld [vmem:[#allocation6 + $0x40] sm:$0xff]
    %v86 = vld [vmem:[#allocation6 + $0x48] sm:$0xff]
    %v87 = vld [vmem:[#allocation6 + $0x50] sm:$0xff]
    %v88 = vld [vmem:[#allocation6 + $0x58] sm:$0xff]
    %v89 = vld [vmem:[#allocation6 + $0x60] sm:$0xff]
    %v90 = vld [vmem:[#allocation6 + $0x68] sm:$0xff]
    %v91 = vld [vmem:[#allocation6 + $0x70] sm:$0xff]
    %v92 = vld [vmem:[#allocation6 + $0x78] sm:$0xff]
    %v93 = vld [vmem:[#allocation6 + $0x80] sm:$0xff]
    %v94 = vld [vmem:[#allocation6 + $0x88] sm:$0xff]
    %v95 = vld [vmem:[#allocation6 + $0x90] sm:$0xff]
    %v96 = vld [vmem:[#allocation6 + $0x98] sm:$0xff]
    %v97 = vld [vmem:[#allocation6 + $0xa0] sm:$0xff]
    %v98 = vld [vmem:[#allocation6 + $0xa8] sm:$0xff]
    %v99 = vld [vmem:[#allocation6 + $0xb0] sm:$0xff]
    %v100 = vld [vmem:[#allocation6 + $0xb8] sm:$0xff]
    %v101 = vld [vmem:[#allocation6 + $0xc0] sm:$0xff]
    %v102 = vld [vmem:[#allocation6 + $0xc8] sm:$0xff]
    %v103 = vld [vmem:[#allocation6 + $0xd0] sm:$0xff]
    %v104 = vld [vmem:[#allocation6 + $0xd8] sm:$0xff]
    %v105 = vld [vmem:[#allocation6 + $0xe0] sm:$0xff]
    %v106 = vld [vmem:[#allocation6 + $0xe8] sm:$0xff]
    %v107 = vld [vmem:[#allocation6 + $0xf0] sm:$0xff]
    %v108 = vld [vmem:[#allocation6 + $0xf8] sm:$0xff]
    %v109 = vld [vmem:[#allocation6 + $0x100] sm:$0xff]
    %v110 = vld [vmem:[#allocation6 + $0x108] sm:$0xff]
    %v111 = vld [vmem:[#allocation6 + $0x110] sm:$0xff]
    %v112 = vld [vmem:[#allocation6 + $0x118] sm:$0xff]
    %v113 = vld [vmem:[#allocation6 + $0x120] sm:$0xff]
    %v114 = vld [vmem:[#allocation6 + $0x128] sm:$0xff]
    %v115 = vld [vmem:[#allocation6 + $0x130] sm:$0xff]
    %v116 = vld [vmem:[#allocation6 + $0x138] sm:$0xff]
    %v117 = vld [vmem:[#allocation6 + $0x140] sm:$0xff]
    %v118 = vld [vmem:[#allocation6 + $0x148] sm:$0xff]
    %v119 = vld [vmem:[#allocation6 + $0x150] sm:$0xff]
    %v120 = vld [vmem:[#allocation6 + $0x158] sm:$0xff]
    %v121 = vld [vmem:[#allocation6 + $0x160] sm:$0xff]
    %v122 = vld [vmem:[#allocation6 + $0x168] sm:$0xff]
    %v123 = vld [vmem:[#allocation6 + $0x170] sm:$0xff]
    %v124 = vld [vmem:[#allocation6 + $0x178] sm:$0xff]
    %v125 = vld [vmem:[#allocation6 + $0x180] sm:$0xff]
    %v126 = vld [vmem:[#allocation6 + $0x188] sm:$0xff]
    %v127 = vld [vmem:[#allocation6 + $0x190] sm:$0xff]
    %v128 = vld [vmem:[#allocation6 + $0x198] sm:$0xff]
    %v129 = vld [vmem:[#allocation6 + $0x1a0] sm:$0xff]
    %v130 = vld [vmem:[#allocation6 + $0x1a8] sm:$0xff]
    %v131 = vld [vmem:[#allocation6 + $0x1b0] sm:$0xff]
    %v132 = vld [vmem:[#allocation6 + $0x1b8] sm:$0xff]
    %v133 = vld [vmem:[#allocation6 + $0x1c0] sm:$0xff]
    %v134 = vld [vmem:[#allocation6 + $0x1c8] sm:$0xff]
    %v135 = vld [vmem:[#allocation6 + $0x1d0] sm:$0xff]
    %v136 = vld [vmem:[#allocation6 + $0x1d8] sm:$0xff]
    %v137 = vld [vmem:[#allocation6 + $0x1e0] sm:$0xff]
    %v138 = vld [vmem:[#allocation6 + $0x1e8] sm:$0xff]
    %v139 = vld [vmem:[#allocation6 + $0x1f0] sm:$0xff]
    %v140 = vld [vmem:[#allocation6 + $0x1f8] sm:$0xff]
    %v141 = vld [vmem:[%s2] sm:$0xf]
    %v143 = vlaneseq
    %v144 = vshrl.u32 %v143, 7
    %v145 = vsub.s32 0, %v144
    %v146 = vrot.slane %v141, %v145
    %v147 = vlaneseq
    %v148 = vshrl.u32 %v147, 7
    %v149 = vsub.s32 1, %v148
    %v150 = vrot.slane %v141, %v149
    %v151 = vlaneseq
    %v152 = vshrl.u32 %v151, 7
    %v153 = vsub.s32 2, %v152
    %v154 = vrot.slane %v141, %v153
    %v155 = vlaneseq
    %v156 = vshrl.u32 %v155, 7
    %v157 = vsub.s32 3, %v156
    %v158 = vrot.slane %v141, %v157
    %163 = vmatprep.subr.mxu0 %v78
    %164 = vmatpush1.msra.mxu0 %v77
    %165 = vmatprep.subr.mxu0 %v82
    %166 = vmatpush1.msra.mxu0 %v81
    %167 = vmatprep.subr.mxu0 %v86
    %168 = vmatpush1.msra.mxu0 %v85
    %169 = vmatprep.subr.mxu0 %v90
    %170 = vmatpush1.msra.mxu0 %v89
    %171 = vmatprep.subr.mxu0 %v94
    %172 = vmatpush1.msra.mxu0 %v93
    %173 = vmatprep.subr.mxu0 %v98
    %174 = vmatpush1.msra.mxu0 %v97
    %175 = vmatprep.subr.mxu0 %v102
    %176 = vmatpush1.msra.mxu0 %v101
    %177 = vmatprep.subr.mxu0 %v106
    %178 = vmatpush1.msra.mxu0 %v105
    %179 = vmatprep.subr.mxu0 %v110
    %180 = vmatpush1.msra.mxu0 %v109
    %181 = vmatprep.subr.mxu0 %v114
    %182 = vmatpush1.msra.mxu0 %v113
    %183 = vmatprep.subr.mxu0 %v118
    %184 = vmatpush1.msra.mxu0 %v117
    %185 = vmatprep.subr.mxu0 %v122
    %186 = vmatpush1.msra.mxu0 %v121
    %187 = vmatprep.subr.mxu0 %v126
    %188 = vmatpush1.msra.mxu0 %v125
    %189 = vmatprep.subr.mxu0 %v130
    %190 = vmatpush1.msra.mxu0 %v129
    %191 = vmatprep.subr.mxu0 %v134
    %192 = vmatpush1.msra.mxu0 %v133
    %193 = vmatprep.subr.mxu0 %v138
    %194 = vmatpush1.msra.mxu0 %v137
    %195 = vmatprep.subr.mxu0 0.0
    %196 = vmatpush1.msra.mxu0 0.0
    %197 = vmatprep.subr.mxu0 0.0
    %198 = vmatpush1.msra.mxu0 0.0
    %199 = vmatprep.subr.mxu0 0.0
    %200 = vmatpush1.msra.mxu0 0.0
    %201 = vmatprep.subr.mxu0 0.0
    %202 = vmatpush1.msra.mxu0 0.0
    %203 = vmatprep.subr.mxu0 0.0
    %204 = vmatpush1.msra.mxu0 0.0
    %205 = vmatprep.subr.mxu0 0.0
    %206 = vmatpush1.msra.mxu0 0.0
    %207 = vmatprep.subr.mxu0 0.0
    %208 = vmatpush1.msra.mxu0 0.0
    %209 = vmatprep.subr.mxu0 0.0
    %210 = vmatpush1.msra.mxu0 0.0
    %211 = vmatprep.subr.mxu0 0.0
    %212 = vmatpush1.msra.mxu0 0.0
    %213 = vmatprep.subr.mxu0 0.0
    %214 = vmatpush1.msra.mxu0 0.0
    %215 = vmatprep.subr.mxu0 0.0
    %216 = vmatpush1.msra.mxu0 0.0
    %217 = vmatprep.subr.mxu0 0.0
    %218 = vmatpush1.msra.mxu0 0.0
    %219 = vmatprep.subr.mxu0 0.0
    %220 = vmatpush1.msra.mxu0 0.0
    %221 = vmatprep.subr.mxu0 0.0
    %222 = vmatpush1.msra.mxu0 0.0
    %223 = vmatprep.subr.mxu0 0.0
    %224 = vmatpush1.msra.mxu0 0.0
    %225 = vmatprep.subr.mxu0 0.0
    %226 = vmatpush1.msra.mxu0 0.0
    %227 = vmatprep.mubr.f32.mxu0 0.0
    %228 = vmatmul.mubr.f32.gmra.mrb[0].mxu0 %v75
    %v229 = vpop.f32.mrb[0].mxu0
    %v230 = vadd.f32 %v146, %v229
    %v231 = vpop.f32.mrb[0].mxu0
    %v232 = vadd.f32 %v150, %v231
    %233 = vmatprep.mubr.f32.mxu0 0.0
    %234 = vmatmul.mubr.f32.gmra.mrb[0].mxu0 %v76
    %v235 = vpop.f32.mrb[0].mxu0
    %v236 = vadd.f32 %v146, %v235
    %v237 = vpop.f32.mrb[0].mxu0
    %v238 = vadd.f32 %v150, %v237
    %239 = vdwg.mxu0
    %240 = vmatprep.subr.mxu0 %v80
    %241 = vmatpush1.msra.mxu0 %v79
    %242 = vmatprep.subr.mxu0 %v84
    %243 = vmatpush1.msra.mxu0 %v83
    %244 = vmatprep.subr.mxu0 %v88
    %245 = vmatpush1.msra.mxu0 %v87
    %246 = vmatprep.subr.mxu0 %v92
    %247 = vmatpush1.msra.mxu0 %v91
    %248 = vmatprep.subr.mxu0 %v96
    %249 = vmatpush1.msra.mxu0 %v95
    %250 = vmatprep.subr.mxu0 %v100
    %251 = vmatpush1.msra.mxu0 %v99
    %252 = vmatprep.subr.mxu0 %v104
    %253 = vmatpush1.msra.mxu0 %v103
    %254 = vmatprep.subr.mxu0 %v108
    %255 = vmatpush1.msra.mxu0 %v107
    %256 = vmatprep.subr.mxu0 %v112
    %257 = vmatpush1.msra.mxu0 %v111
    %258 = vmatprep.subr.mxu0 %v116
    %259 = vmatpush1.msra.mxu0 %v115
    %260 = vmatprep.subr.mxu0 %v120
    %261 = vmatpush1.msra.mxu0 %v119
    %262 = vmatprep.subr.mxu0 %v124
    %263 = vmatpush1.msra.mxu0 %v123
    %264 = vmatprep.subr.mxu0 %v128
    %265 = vmatpush1.msra.mxu0 %v127
    %266 = vmatprep.subr.mxu0 %v132
    %267 = vmatpush1.msra.mxu0 %v131
    %268 = vmatprep.subr.mxu0 %v136
    %269 = vmatpush1.msra.mxu0 %v135
    %270 = vmatprep.subr.mxu0 %v140
    %271 = vmatpush1.msra.mxu0 %v139
    %272 = vmatprep.subr.mxu0 0.0
    %273 = vmatpush1.msra.mxu0 0.0
    %274 = vmatprep.subr.mxu0 0.0
    %275 = vmatpush1.msra.mxu0 0.0
    %276 = vmatprep.subr.mxu0 0.0
    %277 = vmatpush1.msra.mxu0 0.0
    %278 = vmatprep.subr.mxu0 0.0
    %279 = vmatpush1.msra.mxu0 0.0
    %280 = vmatprep.subr.mxu0 0.0
    %281 = vmatpush1.msra.mxu0 0.0
    %282 = vmatprep.subr.mxu0 0.0
    %283 = vmatpush1.msra.mxu0 0.0
    %284 = vmatprep.subr.mxu0 0.0
    %285 = vmatpush1.msra.mxu0 0.0
    %286 = vmatprep.subr.mxu0 0.0
    %287 = vmatpush1.msra.mxu0 0.0
    %288 = vmatprep.subr.mxu0 0.0
    %289 = vmatpush1.msra.mxu0 0.0
    %290 = vmatprep.subr.mxu0 0.0
    %291 = vmatpush1.msra.mxu0 0.0
    %292 = vmatprep.subr.mxu0 0.0
    %293 = vmatpush1.msra.mxu0 0.0
    %294 = vmatprep.subr.mxu0 0.0
    %295 = vmatpush1.msra.mxu0 0.0
    %296 = vmatprep.subr.mxu0 0.0
    %297 = vmatpush1.msra.mxu0 0.0
    %298 = vmatprep.subr.mxu0 0.0
    %299 = vmatpush1.msra.mxu0 0.0
    %300 = vmatprep.subr.mxu0 0.0
    %301 = vmatpush1.msra.mxu0 0.0
    %302 = vmatprep.subr.mxu0 0.0
    %303 = vmatpush1.msra.mxu0 0.0
    %304 = vmatprep.mubr.f32.mxu0 0.0
    %305 = vmatmul.mubr.f32.gmra.mrb[0].mxu0 %v75
    %v306 = vpop.f32.mrb[0].mxu0
    %v307 = vadd.f32 %v154, %v306
    %v308 = vpop.f32.mrb[0].mxu0
    %v309 = vadd.f32 %v158, %v308
    %310 = vmatprep.mubr.f32.mxu0 0.0
    %311 = vmatmul.mubr.f32.gmra.mrb[0].mxu0 %v76
    %v312 = vpop.f32.mrb[0].mxu0
    %v313 = vadd.f32 %v154, %v312
    %v314 = vpop.f32.mrb[0].mxu0
    %v315 = vadd.f32 %v158, %v314
    %316 = vdwg.mxu0
    %v317 = vxor.u32 %v230, 2147483648
    %v318 = vxor.u32 %v232, 2147483648
    %v319 = vxor.u32 %v307, 2147483648
    %v320 = vxor.u32 %v309, 2147483648
    %v321 = vxor.u32 %v236, 2147483648
    %v322 = vxor.u32 %v238, 2147483648
    %v323 = vxor.u32 %v313, 2147483648
    %v324 = vxor.u32 %v315, 2147483648
    %v325 = vmul.f32 %v317, 1.442695
    %v326 = vpow.pop %v325
    %v327 = vmul.f32 %v318, 1.442695
    %v328 = vpow.pop %v327
    %v329 = vmul.f32 %v319, 1.442695
    %v330 = vpow.pop %v329
    %v331 = vmul.f32 %v320, 1.442695
    %v332 = vpow.pop %v331
    %v333 = vmul.f32 %v321, 1.442695
    %v334 = vpow.pop %v333
    %v335 = vmul.f32 %v322, 1.442695
    %v336 = vpow.pop %v335
    %v337 = vmul.f32 %v323, 1.442695
    %v338 = vpow.pop %v337
    %v339 = vmul.f32 %v324, 1.442695
    %v340 = vpow.pop %v339
    %v341 = vadd.f32 %v326, 1.0
    %v342 = vadd.f32 %v328, 1.0
    %v343 = vadd.f32 %v330, 1.0
    %v344 = vadd.f32 %v332, 1.0
    %v345 = vadd.f32 %v334, 1.0
    %v346 = vadd.f32 %v336, 1.0
    %v347 = vadd.f32 %v338, 1.0
    %v348 = vadd.f32 %v340, 1.0
    %v349 = vrcp.pop %v341
    %v350 = vmul.f32 1.0, %v349
    %v351 = vrcp.pop %v342
    %v352 = vmul.f32 1.0, %v351
    %v353 = vrcp.pop %v343
    %v354 = vmul.f32 1.0, %v353
    %v355 = vrcp.pop %v344
    %v356 = vmul.f32 1.0, %v355
    %v357 = vrcp.pop %v345
    %v358 = vmul.f32 1.0, %v357
    %v359 = vrcp.pop %v346
    %v360 = vmul.f32 1.0, %v359
    %v361 = vrcp.pop %v347
    %v362 = vmul.f32 1.0, %v361
    %v363 = vrcp.pop %v348
    %v364 = vmul.f32 1.0, %v363
    %v365 = vmul.f32 %v230, %v350
    %v366 = vmul.f32 %v232, %v352
    %v367 = vmul.f32 %v307, %v354
    %v368 = vmul.f32 %v309, %v356
    %v369 = vmul.f32 %v236, %v358
    %v370 = vmul.f32 %v238, %v360
    %v371 = vmul.f32 %v313, %v362
    %v372 = vmul.f32 %v315, %v364
    %v373 = vld [vmem:[#allocation2] sm:$0xff]
    %v374 = vld [vmem:[#allocation2 + $0x8] sm:$0xff]
    %v375 = vld [vmem:[#allocation8] sm:$0xff]
    %v376 = vld [vmem:[#allocation8 + $0x8] sm:$0xff]
    %v377 = vld [vmem:[#allocation8 + $0x10] sm:$0xff]
    %v378 = vld [vmem:[#allocation8 + $0x18] sm:$0xff]
    %v379 = vld [vmem:[#allocation8 + $0x20] sm:$0xff]
    %v380 = vld [vmem:[#allocation8 + $0x28] sm:$0xff]
    %v381 = vld [vmem:[#allocation8 + $0x30] sm:$0xff]
    %v382 = vld [vmem:[#allocation8 + $0x38] sm:$0xff]
    %v383 = vld [vmem:[#allocation8 + $0x40] sm:$0xff]
    %v384 = vld [vmem:[#allocation8 + $0x48] sm:$0xff]
    %v385 = vld [vmem:[#allocation8 + $0x50] sm:$0xff]
    %v386 = vld [vmem:[#allocation8 + $0x58] sm:$0xff]
    %v387 = vld [vmem:[#allocation8 + $0x60] sm:$0xff]
    %v388 = vld [vmem:[#allocation8 + $0x68] sm:$0xff]
    %v389 = vld [vmem:[#allocation8 + $0x70] sm:$0xff]
    %v390 = vld [vmem:[#allocation8 + $0x78] sm:$0xff]
    %v391 = vld [vmem:[#allocation8 + $0x80] sm:$0xff]
    %v392 = vld [vmem:[#allocation8 + $0x88] sm:$0xff]
    %v393 = vld [vmem:[#allocation8 + $0x90] sm:$0xff]
    %v394 = vld [vmem:[#allocation8 + $0x98] sm:$0xff]
    %v395 = vld [vmem:[#allocation8 + $0xa0] sm:$0xff]
    %v396 = vld [vmem:[#allocation8 + $0xa8] sm:$0xff]
    %v397 = vld [vmem:[#allocation8 + $0xb0] sm:$0xff]
    %v398 = vld [vmem:[#allocation8 + $0xb8] sm:$0xff]
    %v399 = vld [vmem:[#allocation8 + $0xc0] sm:$0xff]
    %v400 = vld [vmem:[#allocation8 + $0xc8] sm:$0xff]
    %v401 = vld [vmem:[#allocation8 + $0xd0] sm:$0xff]
    %v402 = vld [vmem:[#allocation8 + $0xd8] sm:$0xff]
    %v403 = vld [vmem:[#allocation8 + $0xe0] sm:$0xff]
    %v404 = vld [vmem:[#allocation8 + $0xe8] sm:$0xff]
    %v405 = vld [vmem:[#allocation8 + $0xf0] sm:$0xff]
    %v406 = vld [vmem:[#allocation8 + $0xf8] sm:$0xff]
    %v407 = vld [vmem:[#allocation8 + $0x100] sm:$0xff]
    %v408 = vld [vmem:[#allocation8 + $0x108] sm:$0xff]
    %v409 = vld [vmem:[#allocation8 + $0x110] sm:$0xff]
    %v410 = vld [vmem:[#allocation8 + $0x118] sm:$0xff]
    %v411 = vld [vmem:[#allocation8 + $0x120] sm:$0xff]
    %v412 = vld [vmem:[#allocation8 + $0x128] sm:$0xff]
    %v413 = vld [vmem:[#allocation8 + $0x130] sm:$0xff]
    %v414 = vld [vmem:[#allocation8 + $0x138] sm:$0xff]
    %v415 = vld [vmem:[#allocation8 + $0x140] sm:$0xff]
    %v416 = vld [vmem:[#allocation8 + $0x148] sm:$0xff]
    %v417 = vld [vmem:[#allocation8 + $0x150] sm:$0xff]
    %v418 = vld [vmem:[#allocation8 + $0x158] sm:$0xff]
    %v419 = vld [vmem:[#allocation8 + $0x160] sm:$0xff]
    %v420 = vld [vmem:[#allocation8 + $0x168] sm:$0xff]
    %v421 = vld [vmem:[#allocation8 + $0x170] sm:$0xff]
    %v422 = vld [vmem:[#allocation8 + $0x178] sm:$0xff]
    %v423 = vld [vmem:[#allocation8 + $0x180] sm:$0xff]
    %v424 = vld [vmem:[#allocation8 + $0x188] sm:$0xff]
    %v425 = vld [vmem:[#allocation8 + $0x190] sm:$0xff]
    %v426 = vld [vmem:[#allocation8 + $0x198] sm:$0xff]
    %v427 = vld [vmem:[#allocation8 + $0x1a0] sm:$0xff]
    %v428 = vld [vmem:[#allocation8 + $0x1a8] sm:$0xff]
    %v429 = vld [vmem:[#allocation8 + $0x1b0] sm:$0xff]
    %v430 = vld [vmem:[#allocation8 + $0x1b8] sm:$0xff]
    %v431 = vld [vmem:[#allocation8 + $0x1c0] sm:$0xff]
    %v432 = vld [vmem:[#allocation8 + $0x1c8] sm:$0xff]
    %v433 = vld [vmem:[#allocation8 + $0x1d0] sm:$0xff]
    %v434 = vld [vmem:[#allocation8 + $0x1d8] sm:$0xff]
    %v435 = vld [vmem:[#allocation8 + $0x1e0] sm:$0xff]
    %v436 = vld [vmem:[#allocation8 + $0x1e8] sm:$0xff]
    %v437 = vld [vmem:[#allocation8 + $0x1f0] sm:$0xff]
    %v438 = vld [vmem:[#allocation8 + $0x1f8] sm:$0xff]
    %439 = vmatprep.subr.mxu0 0.0
    %440 = vmatpush1.msra.mxu0 %v375
    %441 = vmatprep.subr.mxu0 0.0
    %442 = vmatpush1.msra.mxu0 %v376
    %443 = vmatprep.subr.mxu0 0.0
    %444 = vmatpush1.msra.mxu0 %v377
    %445 = vmatprep.subr.mxu0 0.0
    %446 = vmatpush1.msra.mxu0 %v378
    %447 = vmatprep.subr.mxu0 0.0
    %448 = vmatpush1.msra.mxu0 %v379
    %449 = vmatprep.subr.mxu0 0.0
    %450 = vmatpush1.msra.mxu0 %v380
    %451 = vmatprep.subr.mxu0 0.0
    %452 = vmatpush1.msra.mxu0 %v381
    %453 = vmatprep.subr.mxu0 0.0
    %454 = vmatpush1.msra.mxu0 %v382
    %455 = vmatprep.subr.mxu0 0.0
    %456 = vmatpush1.msra.mxu0 %v383
    %457 = vmatprep.subr.mxu0 0.0
    %458 = vmatpush1.msra.mxu0 %v384
    %459 = vmatprep.subr.mxu0 0.0
    %460 = vmatpush1.msra.mxu0 %v385
    %461 = vmatprep.subr.mxu0 0.0
    %462 = vmatpush1.msra.mxu0 %v386
    %463 = vmatprep.subr.mxu0 0.0
    %464 = vmatpush1.msra.mxu0 %v387
    %465 = vmatprep.subr.mxu0 0.0
    %466 = vmatpush1.msra.mxu0 %v388
    %467 = vmatprep.subr.mxu0 0.0
    %468 = vmatpush1.msra.mxu0 %v389
    %469 = vmatprep.subr.mxu0 0.0
    %470 = vmatpush1.msra.mxu0 %v390
    %471 = vmatprep.subr.mxu0 0.0
    %472 = vmatpush1.msra.mxu0 %v391
    %473 = vmatprep.subr.mxu0 0.0
    %474 = vmatpush1.msra.mxu0 %v392
    %475 = vmatprep.subr.mxu0 0.0
    %476 = vmatpush1.msra.mxu0 %v393
    %477 = vmatprep.subr.mxu0 0.0
    %478 = vmatpush1.msra.mxu0 %v394
    %479 = vmatprep.subr.mxu0 0.0
    %480 = vmatpush1.msra.mxu0 %v395
    %481 = vmatprep.subr.mxu0 0.0
    %482 = vmatpush1.msra.mxu0 %v396
    %483 = vmatprep.subr.mxu0 0.0
    %484 = vmatpush1.msra.mxu0 %v397
    %485 = vmatprep.subr.mxu0 0.0
    %486 = vmatpush1.msra.mxu0 %v398
    %487 = vmatprep.subr.mxu0 0.0
    %488 = vmatpush1.msra.mxu0 %v399
    %489 = vmatprep.subr.mxu0 0.0
    %490 = vmatpush1.msra.mxu0 %v400
    %491 = vmatprep.subr.mxu0 0.0
    %492 = vmatpush1.msra.mxu0 %v401
    %493 = vmatprep.subr.mxu0 0.0
    %494 = vmatpush1.msra.mxu0 %v402
    %495 = vmatprep.subr.mxu0 0.0
    %496 = vmatpush1.msra.mxu0 %v403
    %497 = vmatprep.subr.mxu0 0.0
    %498 = vmatpush1.msra.mxu0 %v404
    %499 = vmatprep.subr.mxu0 0.0
    %500 = vmatpush1.msra.mxu0 %v405
    %501 = vmatprep.subr.mxu0 0.0
    %502 = vmatpush1.msra.mxu0 %v406
    %503 = vmatprep.mubr.f32.mxu0 %v366
    %504 = vmatmul.mubr.f32.gmra.mrb[0].mxu0 %v365
    %v505 = vpop.f32.mrb[0].mxu0
    %v506 = vadd.f32 0.0, %v505
    %v507 = vpop.f32.mrb[0].mxu0
    %508 = vmatprep.mubr.f32.mxu0 %v370
    %509 = vmatmul.mubr.f32.gmra.mrb[0].mxu0 %v369
    %v510 = vpop.f32.mrb[0].mxu0
    %v511 = vadd.f32 0.0, %v510
    %v512 = vpop.f32.mrb[0].mxu0
    %513 = vdwg.mxu0
    %514 = vmatprep.subr.mxu0 0.0
    %515 = vmatpush1.msra.mxu0 %v407
    %516 = vmatprep.subr.mxu0 0.0
    %517 = vmatpush1.msra.mxu0 %v408
    %518 = vmatprep.subr.mxu0 0.0
    %519 = vmatpush1.msra.mxu0 %v409
    %520 = vmatprep.subr.mxu0 0.0
    %521 = vmatpush1.msra.mxu0 %v410
    %522 = vmatprep.subr.mxu0 0.0
    %523 = vmatpush1.msra.mxu0 %v411
    %524 = vmatprep.subr.mxu0 0.0
    %525 = vmatpush1.msra.mxu0 %v412
    %526 = vmatprep.subr.mxu0 0.0
    %527 = vmatpush1.msra.mxu0 %v413
    %528 = vmatprep.subr.mxu0 0.0
    %529 = vmatpush1.msra.mxu0 %v414
    %530 = vmatprep.subr.mxu0 0.0
    %531 = vmatpush1.msra.mxu0 %v415
    %532 = vmatprep.subr.mxu0 0.0
    %533 = vmatpush1.msra.mxu0 %v416
    %534 = vmatprep.subr.mxu0 0.0
    %535 = vmatpush1.msra.mxu0 %v417
    %536 = vmatprep.subr.mxu0 0.0
    %537 = vmatpush1.msra.mxu0 %v418
    %538 = vmatprep.subr.mxu0 0.0
    %539 = vmatpush1.msra.mxu0 %v419
    %540 = vmatprep.subr.mxu0 0.0
    %541 = vmatpush1.msra.mxu0 %v420
    %542 = vmatprep.subr.mxu0 0.0
    %543 = vmatpush1.msra.mxu0 %v421
    %544 = vmatprep.subr.mxu0 0.0
    %545 = vmatpush1.msra.mxu0 %v422
    %546 = vmatprep.subr.mxu0 0.0
    %547 = vmatpush1.msra.mxu0 %v423
    %548 = vmatprep.subr.mxu0 0.0
    %549 = vmatpush1.msra.mxu0 %v424
    %550 = vmatprep.subr.mxu0 0.0
    %551 = vmatpush1.msra.mxu0 %v425
    %552 = vmatprep.subr.mxu0 0.0
    %553 = vmatpush1.msra.mxu0 %v426
    %554 = vmatprep.subr.mxu0 0.0
    %555 = vmatpush1.msra.mxu0 %v427
    %556 = vmatprep.subr.mxu0 0.0
    %557 = vmatpush1.msra.mxu0 %v428
    %558 = vmatprep.subr.mxu0 0.0
    %559 = vmatpush1.msra.mxu0 %v429
    %560 = vmatprep.subr.mxu0 0.0
    %561 = vmatpush1.msra.mxu0 %v430
    %562 = vmatprep.subr.mxu0 0.0
    %563 = vmatpush1.msra.mxu0 %v431
    %564 = vmatprep.subr.mxu0 0.0
    %565 = vmatpush1.msra.mxu0 %v432
    %566 = vmatprep.subr.mxu0 0.0
    %567 = vmatpush1.msra.mxu0 %v433
    %568 = vmatprep.subr.mxu0 0.0
    %569 = vmatpush1.msra.mxu0 %v434
    %570 = vmatprep.subr.mxu0 0.0
    %571 = vmatpush1.msra.mxu0 %v435
    %572 = vmatprep.subr.mxu0 0.0
    %573 = vmatpush1.msra.mxu0 %v436
    %574 = vmatprep.subr.mxu0 0.0
    %575 = vmatpush1.msra.mxu0 %v437
    %576 = vmatprep.subr.mxu0 0.0
    %577 = vmatpush1.msra.mxu0 %v438
    %578 = vmatprep.mubr.f32.mxu0 %v368
    %579 = vmatmul.mubr.f32.gmra.mrb[0].mxu0 %v367
    %v580 = vpop.f32.mrb[0].mxu0
    %v581 = vadd.f32 %v506, %v580
    %v582 = vpop.f32.mrb[0].mxu0
    %583 = vmatprep.mubr.f32.mxu0 %v372
    %584 = vmatmul.mubr.f32.gmra.mrb[0].mxu0 %v371
    %v585 = vpop.f32.mrb[0].mxu0
    %v586 = vadd.f32 %v511, %v585
    %v587 = vpop.f32.mrb[0].mxu0
    %588 = vdwg.mxu0
    %v589 = vadd.f32 %v373, %v581
    %v590 = vadd.f32 %v374, %v586
    %591 = vst [vmem:[#allocation2] sm:$0xff] %v589
    %592 = vst [vmem:[#allocation2 + $0x8] sm:$0xff] %v590
    // Predicated region
    $region38: #{feed_forward.1} parent=1 // pred_check
      %p593 = pneg %p62
    $region39: #{feed_forward.1} parent=1 // pred_check_branch
      %595 = sbr.rel (%p593) target = $region41
    $region40: #{feed_forward.1} parent=1 // pred_region
      %v596 = vld [vmem:[#allocation2] sm:$0xff]
      %v597 = vld [vmem:[#allocation2 + $0x8] sm:$0xff]
      %598 = vst [vmem:[#allocation9] sm:$0xff] %v596
      %599 = vst [vmem:[#allocation9 + $0x8] sm:$0xff] %v597
    $region41: #{feed_forward.1} parent=1 // pred_fallthru
      _
    // Predicated region
    $region42: #{feed_forward.1} parent=1 // pred_check
      _
    $region43: #{feed_forward.1} parent=1 // pred_check_branch
      %601 = sbr.rel (0) target = $region45
    $region44: #{feed_forward.1} parent=1 // pred_region
      %s603 = ssub.s32 256, 256
      %604 = vsyncadd [#allocation5], %s603
      %s605 = sshll.u32 [#allocation9], 4
      %s606 = int_to_ptr.vmem [resolvable:$true] %s605
      %611 = dma.vmem_to_hbm [thread:$0]  %s606, 256, %s5, [#allocation5], 128, 128, 8
    $region45: #{feed_forward.1} parent=1 // pred_fallthru
      _
    // Predicated region
    $region46: #{feed_forward.1} parent=1 // pred_check
      _
    $region47: #{feed_forward.1} parent=1 // pred_check_branch
      %613 = sbr.rel (0) target = $region49
    $region48: #{feed_forward.1} parent=1 // pred_region
      %614 = dma.done [#allocation5], 256
    $region49: #{feed_forward.1} parent=1 // pred_fallthru
      _
    %615 = vsyncpa [#allocation4], 1
    %616 = vsyncpa [#allocation7], 1
    %617 = vsyncpa [#allocation5], 1

</llo_original>
